<compile_context>
chip_gen: v7x
topology: tpu7x:2x2x1
jax: 0.10.0
libtpu: 0.0.40
codegen_flags: <defaults>
</compile_context>

<pallas_src>
import math

import jax
import jax.numpy as jnp
from jax.experimental import pallas as pl
from jax.experimental.pallas import tpu as pltpu


# ------------------------------ Pallas kernel ------------------------------ #

def _dyt_kernel(alpha_ref, x_ref, w_ref, b_ref, o_ref):
    """y = tanh(alpha * x) * w + b  on one (tr, tl) tile.

    alpha_ref: SMEM, shape (1,)
    x_ref/o_ref: VMEM, (tr, tl)
    w_ref/b_ref: VMEM, (1, tl)   (broadcast over sublanes)
    """
    a = alpha_ref[0]
    xv = x_ref[...].astype(jnp.float32)
    o_ref[...] = (jnp.tanh(a * xv) * w_ref[...] + b_ref[...]).astype(o_ref.dtype)


# ------------------------------ tile selection ------------------------------ #

_BUDGET = 2 * 1024 * 1024  # bytes per live buffer; 4x this (in+out, double-buffered)
                           # stays well under every generation's default scoped VMEM.


def _pick_tiles(R, L, itemsize, budget=_BUDGET):
    """Pick (tr, tl): tr multiple of 8 (or R), tl multiple of 128 (or L),
    with tr*tl*itemsize ~= budget."""
    # Lane (minor) tile.
    if L * 8 * itemsize <= budget:
        tl = L
    else:
        tl = max(128, (budget // (8 * itemsize)) // 128 * 128)
        if L >= 128:
            tl = min(tl, (L // 128) * 128)
        else:
            tl = L
    # Row (sublane) tile.
    max_tr = max(8, (budget // (tl * itemsize)) // 8 * 8)
    tr = R if R <= max_tr else max_tr
    # Give the pipeline / v7x megacore >=~8 grid steps when it costs nothing.
    nblocks = (-(-R // tr)) * (-(-L // tl))
    if nblocks < 8 and tr > 8:
        tr8 = max(8, ((-(-R // 8)) + 7) // 8 * 8)
        if tr8 < tr and tr8 * tl * itemsize >= 128 * 1024:
            tr = tr8
    return tr, tl


def _choose_fold(M, C):
    """Fold G rows into the lane axis so the minor dim G*C is a multiple of 128.

    Returns (G, pad_rows). Only folds when the required row padding is <= M/8
    (so the wrapper-side pad copy is cheap); otherwise G=1 (no fold).
    """
    if M <= 1 or C % 128 == 0:
        return 1, 0
    G = math.lcm(C, 128) // C
    if G <= M:
        pad = (-M) % G
        if pad == 0 or pad * 8 <= M:
            return G, pad
    return 1, 0


# ------------------------------ call wrapper ------------------------------- #

def _dyt_rows(x2, w_row, b_row, alpha1, out_dtype):
    """x2: (R, L), w_row/b_row: (1, L) f32, alpha1: (1,) f32."""
    R, L = x2.shape
    itemsize = jnp.dtype(x2.dtype).itemsize
    tr, tl = _pick_tiles(R, L, itemsize)
    grid = (pl.cdiv(R, tr), pl.cdiv(L, tl))
    return pl.pallas_call(
        _dyt_kernel,
        out_shape=jax.ShapeDtypeStruct((R, L), out_dtype),
        grid=grid,
        in_specs=[
            pl.BlockSpec(memory_space=pltpu.MemorySpace.SMEM),      # alpha (1,)
            pl.BlockSpec((tr, tl), lambda i, j: (i, j)),            # x tile
            pl.BlockSpec((1, tl), lambda i, j: (0, j)),             # weight row
            pl.BlockSpec((1, tl), lambda i, j: (0, j)),             # bias row
        ],
        out_specs=pl.BlockSpec((tr, tl), lambda i, j: (i, j)),
        compiler_params=pltpu.CompilerParams(
            dimension_semantics=("parallel", "parallel")),
    )(alpha1, x2, w_row, b_row)


def _dyt_channels_last(x, alpha, weight, bias):
    orig_shape = x.shape
    C = x.shape[-1]
    M = math.prod(x.shape[:-1]) if x.ndim > 1 else 1

    G, pad = _choose_fold(M, C)
    x2 = x.reshape(M, C)
    if pad:
        x2 = jnp.pad(x2, ((0, pad), (0, 0)))
    Mp = M + pad
    R, L = Mp // G, G * C
    x2 = x2.reshape(R, L)

    w_row = jnp.tile(weight.reshape(1, C).astype(jnp.float32), (1, G))   # (1, L)
    b_row = jnp.tile(bias.reshape(1, C).astype(jnp.float32), (1, G))     # (1, L)
    a1 = jnp.asarray(alpha, jnp.float32).reshape(1)

    out = _dyt_rows(x2, w_row, b_row, a1, x.dtype).reshape(Mp, C)
    if pad:
        out = out[:M]
    return out.reshape(orig_shape)


def _dyt_channels_first(x, alpha, weight, bias):
    """NCHW (or NC*) path: weight[c] per element -> flatten to (B, C*S) rows
    with weight/bias pre-expanded via jnp.repeat, then reuse the rows kernel."""
    orig_shape = x.shape
    B, C = x.shape[0], x.shape[1]
    S = math.prod(x.shape[2:]) if x.ndim > 2 else 1

    w_full = jnp.repeat(weight.astype(jnp.float32), S)    # (C*S,)
    b_full = jnp.repeat(bias.astype(jnp.float32), S)      # (C*S,)
    CS = C * S

    G, pad = _choose_fold(B, CS)
    x2 = x.reshape(B, CS)
    if pad:
        x2 = jnp.pad(x2, ((0, pad), (0, 0)))
    Bp = B + pad
    R, L = Bp // G, G * CS
    x2 = x2.reshape(R, L)

    w_row = jnp.tile(w_full.reshape(1, CS), (1, G))        # (1, L)
    b_row = jnp.tile(b_full.reshape(1, CS), (1, G))        # (1, L)
    a1 = jnp.asarray(alpha, jnp.float32).reshape(1)

    out = _dyt_rows(x2, w_row, b_row, a1, x.dtype).reshape(Bp, CS)
    if pad:
        out = out[:B]
    return out.reshape(orig_shape)


def dynamic_tanh(x, alpha, weight, bias, channels_last):
    """JAX/Pallas equivalent of DynamicTanh.forward."""
    if channels_last:
        return _dyt_channels_last(x, alpha, weight, bias)
    return _dyt_channels_first(x, alpha, weight, bias)


# ----------------------------------- main ----------------------------------- #

if __name__ == "__main__":
    B, C, H, W = 2, 4, 16, 16

    key = jax.random.PRNGKey(0)
    k1, k2, k3, k4, k5 = jax.random.split(key, 5)

    alpha = jnp.float32(0.5)                                    # alpha_init_value
    weight = 1.0 + 0.1 * jax.random.normal(k2, (C,), jnp.float32)
    bias = 0.1 * jax.random.normal(k3, (C,), jnp.float32)

    # channels_first (NCHW) path: weight[:, None, None] broadcast
    x_cf = jax.random.normal(k1, (B, C, H, W), jnp.float32)
    out_cf = jax.block_until_ready(dynamic_tanh(x_cf, alpha, weight, bias,
                                                channels_last=False))
    ref_cf = jnp.tanh(alpha * x_cf) * weight[:, None, None] + bias[:, None, None]

    # channels_last path: weight broadcast over the trailing dim
    x_cl = jax.random.normal(k4, (B, H, W, C), jnp.float32)
    out_cl = jax.block_until_ready(dynamic_tanh(x_cl, alpha, weight, bias,
                                                channels_last=True))
    ref_cl = jnp.tanh(alpha * x_cl) * weight + bias

    # channels_last with a row count that needs padding (exercises the pad path)
    x_tok = jax.random.normal(k5, (2, 500, C), jnp.float32)     # M=1000, G=32
    out_tok = jax.block_until_ready(dynamic_tanh(x_tok, alpha, weight, bias,
                                                 channels_last=True))
    ref_tok = jnp.tanh(alpha * x_tok) * weight + bias

    assert out_cf.shape == x_cf.shape, out_cf.shape
    assert out_cl.shape == x_cl.shape, out_cl.shape
    assert out_tok.shape == x_tok.shape, out_tok.shape
    err = max(float(jnp.max(jnp.abs(out_cf - ref_cf))),
              float(jnp.max(jnp.abs(out_cl - ref_cl))),
              float(jnp.max(jnp.abs(out_tok - ref_tok))))
    assert err < 1e-4, f"max abs err {err}"
    print("KERNEL_OK")
</pallas_src>

<mosaic_0001>
module attributes {stable_mosaic.version = 11 : i64} {
  func.func @_dyt_kernel(%arg0: i32, %arg1: i32, %arg2: memref<1xf32, #tpu.memory_space<smem>>, %arg3: memref<2x1024xf32, #tpu.memory_space<vmem>>, %arg4: memref<1x1024xf32, #tpu.memory_space<vmem>>, %arg5: memref<1x1024xf32, #tpu.memory_space<vmem>>, %arg6: memref<2x1024xf32, #tpu.memory_space<vmem>>) attributes {dimension_semantics = [#tpu.dimension_semantics<parallel>, #tpu.dimension_semantics<parallel>], iteration_bounds = array<i64: 1, 1>, scalar_prefetch = 0 : i64, scratch_operands = 0 : i64, tpu.core_type = #tpu.core_type<tc>, window_params = [{transform_indices = @transform_0, window_bounds = array<i64: 1>}, {transform_indices = @transform_1, window_bounds = array<i64: 2, 1024>}, {transform_indices = @transform_2, window_bounds = array<i64: 1, 1024>}, {transform_indices = @transform_3, window_bounds = array<i64: 1, 1024>}, {transform_indices = @transform_4, window_bounds = array<i64: 2, 1024>}]} {
    %c0 = arith.constant 0 : index
    %0 = memref.load %arg2[%c0] : memref<1xf32, #tpu.memory_space<smem>>
    %c0_0 = arith.constant 0 : index
    %c0_1 = arith.constant 0 : index
    %1 = vector.load %arg3[%c0_0, %c0_1] : memref<2x1024xf32, #tpu.memory_space<vmem>>, vector<2x1024xf32>
    %2 = vector.broadcast %0 : f32 to vector<2x1024xf32>
    %3 = arith.mulf %2, %1 : vector<2x1024xf32>
    %4 = math.tanh %3 : vector<2x1024xf32>
    %c0_2 = arith.constant 0 : index
    %c0_3 = arith.constant 0 : index
    %5 = vector.load %arg4[%c0_2, %c0_3] : memref<1x1024xf32, #tpu.memory_space<vmem>>, vector<1x1024xf32>
    %6 = vector.broadcast %5 : vector<1x1024xf32> to vector<2x1024xf32>
    %7 = arith.mulf %4, %6 : vector<2x1024xf32>
    %c0_4 = arith.constant 0 : index
    %c0_5 = arith.constant 0 : index
    %8 = vector.load %arg5[%c0_4, %c0_5] : memref<1x1024xf32, #tpu.memory_space<vmem>>, vector<1x1024xf32>
    %9 = vector.broadcast %8 : vector<1x1024xf32> to vector<2x1024xf32>
    %10 = arith.addf %7, %9 : vector<2x1024xf32>
    %c0_6 = arith.constant 0 : index
    %c0_7 = arith.constant 0 : index
    %11 = vector.load %arg6[%c0_6, %c0_7] : memref<2x1024xf32, #tpu.memory_space<vmem>>, vector<2x1024xf32>
    tpu.vector_store %arg6[%c0_6, %c0_7], %10 {strides = array<i32>} : memref<2x1024xf32, #tpu.memory_space<vmem>>, vector<2x1024xf32>,
    return
  }
  func.func @transform_0(%arg0: i32, %arg1: i32) -> i32 {
    %c0_i32 = arith.constant 0 : i32
    %c0_i32_0 = arith.constant 0 : i32
    return %c0_i32 : i32
  }
  func.func @transform_1(%arg0: i32, %arg1: i32) -> (i32, i32) {
    %c0_i32 = arith.constant 0 : i32
    return %arg0, %arg1 : i32, i32
  }
  func.func @transform_2(%arg0: i32, %arg1: i32) -> (i32, i32) {
    %c0_i32 = arith.constant 0 : i32
    %c0_i32_0 = arith.constant 0 : i32
    return %c0_i32, %arg1 : i32, i32
  }
  func.func @transform_3(%arg0: i32, %arg1: i32) -> (i32, i32) {
    %c0_i32 = arith.constant 0 : i32
    %c0_i32_0 = arith.constant 0 : i32
    return %c0_i32, %arg1 : i32, i32
  }
  func.func @transform_4(%arg0: i32, %arg1: i32) -> (i32, i32) {
    %c0_i32 = arith.constant 0 : i32
    return %arg0, %arg1 : i32, i32
  }
}

</mosaic_0001>

<llo_original>
// kernel: tpu_custom_call.1
$region0: #{tpu_custom_call.1}
  #allocation0 [shape = 'u32[]', space=smem, size = 0x4, offset = 0x4, fixed_abs, tag = 'smem constant byte address 0x4 - core index']
  #allocation1 [shape = 'u32[144,128]{1,0:T(1,128)}', space=vmem, size = 0x12000, scoped, tag = 'internal scratch']
  #allocation2 [shape = 'f32[1]{0:T(128)S(6)}', space=smem, size = 0x200, scoped, tag = 'scoped memory for tpu_custom_call.1']
  %s0 = inlined_call_operand.<no memory space> [shape: f32[1], index: 0, kind: input, shape index: {}]
  %s1 = inlined_call_operand.hbm [shape: f32[2,1024], index: 1, kind: input, shape index: {}]
  %s2 = inlined_call_operand.hbm [shape: f32[1,1024], index: 2, kind: input, shape index: {}]
  %s3 = inlined_call_operand.vmem [shape: f32[1,1024], index: 3, kind: input, shape index: {}]
  %s4 = inlined_call_operand.hbm [shape: f32[2,1024], index: 4, kind: output, shape index: {}]
  %s5 = sld [smem:[#allocation0]]
  $region34: #{tpu_custom_call.1} parent=0
    _
  %s7 = ssub.s32 1, %s5
  %s8 = scalar_select 0, %s7, %s5
  %9 = sst [smem:[#allocation2]] %s0
  $region1: #{tpu_custom_call.1} parent=0
    #allocation3 [shape = 'u8[8192]{0}', space=vmem, size = 0x2000, scoped, tag = 'input window, operand 1, single buffered']
    #allocation4 [shape = 's32[1]{0}', space=sflag, size = 0x4, scoped, tag = 'scoped memory for tpu_custom_call.1']
    #allocation5 [shape = 's32[1]{0}', space=sflag, size = 0x4, scoped, tag = 'scoped memory for tpu_custom_call.1']
    #allocation6 [shape = 'u8[4096]{0}', space=vmem, size = 0x1000, scoped, tag = 'input window, operand 2, single buffered']
    #allocation7 [shape = 's32[1]{0}', space=sflag, size = 0x4, scoped, tag = 'scoped memory for tpu_custom_call.1']
    #allocation8 [shape = 'u8[8192]{0}', space=vmem, size = 0x2000, scoped, tag = 'output window, operand 0, single buffered']
    %10 = vsyncpa [#allocation4], 0
    %11 = vsyncpa [#allocation7], 0
    %12 = vsyncpa [#allocation5], 0
    // Predicated region
    $region2: #{tpu_custom_call.1} parent=1 // pred_check
      _
    $region3: #{tpu_custom_call.1} parent=1 // pred_check_branch
      %14 = sbr.rel (0) target = $region5
    $region4: #{tpu_custom_call.1} parent=1 // pred_region
      _
    $region5: #{tpu_custom_call.1} parent=1 // pred_fallthru
      _
    // Predicated region
    $region6: #{tpu_custom_call.1} parent=1 // pred_check
      _
    $region7: #{tpu_custom_call.1} parent=1 // pred_check_branch
      %16 = sbr.rel (0) target = $region9
    $region8: #{tpu_custom_call.1} parent=1 // pred_region
      %s18 = ssub.s32 256, 256
      %19 = vsyncadd [#allocation4], %s18
      %s21 = sshll.u32 [#allocation3], 4
      %s22 = int_to_ptr.vmem [resolvable:$true] %s21
      %24 = dma.hbm_to_vmem [thread:$0]  %s1, 256, %s22, [#allocation4]
    $region9: #{tpu_custom_call.1} parent=1 // pred_fallthru
      _
    // Predicated region
    $region10: #{tpu_custom_call.1} parent=1 // pred_check
      _
    $region11: #{tpu_custom_call.1} parent=1 // pred_check_branch
      %26 = sbr.rel (0) target = $region13
    $region12: #{tpu_custom_call.1} parent=1 // pred_region
      %s28 = ssub.s32 128, 128
      %29 = vsyncadd [#allocation7], %s28
      %s31 = sshll.u32 [#allocation6], 4
      %s32 = int_to_ptr.vmem [resolvable:$true] %s31
      %34 = dma.hbm_to_vmem [thread:$0]  %s2, 128, %s32, [#allocation7]
    $region13: #{tpu_custom_call.1} parent=1 // pred_fallthru
      _
    // Predicated region
    $region14: #{tpu_custom_call.1} parent=1 // pred_check
      _
    $region15: #{tpu_custom_call.1} parent=1 // pred_check_branch
      %36 = sbr.rel (0) target = $region17
    $region16: #{tpu_custom_call.1} parent=1 // pred_region
      _
    $region17: #{tpu_custom_call.1} parent=1 // pred_fallthru
      _
    // Predicated region
    $region18: #{tpu_custom_call.1} parent=1 // pred_check
      _
    $region19: #{tpu_custom_call.1} parent=1 // pred_check_branch
      %38 = sbr.rel (0) target = $region21
    $region20: #{tpu_custom_call.1} parent=1 // pred_region
      %39 = dma.done [#allocation4], 256
    $region21: #{tpu_custom_call.1} parent=1 // pred_fallthru
      _
    // Predicated region
    $region22: #{tpu_custom_call.1} parent=1 // pred_check
      _
    $region23: #{tpu_custom_call.1} parent=1 // pred_check_branch
      %41 = sbr.rel (0) target = $region25
    $region24: #{tpu_custom_call.1} parent=1 // pred_region
      %42 = dma.done [#allocation7], 128
    $region25: #{tpu_custom_call.1} parent=1 // pred_fallthru
      _
    %s43 = sld [smem:[#allocation2]]
    %v44 = vld [vmem:[#allocation3] sm:$0xff]
    %v45 = vld [vmem:[#allocation3 + $0x8] sm:$0xff]
    %v46 = vstv %s43
    %v47 = vmul.f32 %v46, %v44
    %v48 = vmul.f32 %v46, %v45
    %v49 = vtanh.pop %v47
    %v50 = vtanh.pop %v48
    %v51 = vld [vmem:[#allocation6] sm:$0xff]
    %v53 = vlaneseq
    %v54 = vshrl.u32 %v53, 7
    %v55 = vsub.s32 0, %v54
    %v56 = vrot.slane %v51, %v55
    %v57 = vlaneseq
    %v58 = vshrl.u32 %v57, 7
    %v59 = vsub.s32 1, %v58
    %v60 = vrot.slane %v51, %v59
    %v61 = vlaneseq
    %v62 = vshrl.u32 %v61, 7
    %v63 = vsub.s32 2, %v62
    %v64 = vrot.slane %v51, %v63
    %v65 = vlaneseq
    %v66 = vshrl.u32 %v65, 7
    %v67 = vsub.s32 3, %v66
    %v68 = vrot.slane %v51, %v67
    %v69 = vlaneseq
    %v70 = vshrl.u32 %v69, 7
    %v71 = vsub.s32 4, %v70
    %v72 = vrot.slane %v51, %v71
    %v73 = vlaneseq
    %v74 = vshrl.u32 %v73, 7
    %v75 = vsub.s32 5, %v74
    %v76 = vrot.slane %v51, %v75
    %v77 = vlaneseq
    %v78 = vshrl.u32 %v77, 7
    %v79 = vsub.s32 6, %v78
    %v80 = vrot.slane %v51, %v79
    %v81 = vlaneseq
    %v82 = vshrl.u32 %v81, 7
    %v83 = vsub.s32 7, %v82
    %v84 = vrot.slane %v51, %v83
    %v85 = vcombine.low %v56, %v60
    %v86 = vcombine.low %v64, %v68
    %v88 = vunpack.c.l.s4 1983009808
    %v89 = vunpack.c.0.s8 %v88
    %v90 = vlaneseq
    %v91 = vshrl.u32 %v90, 7
    %v92 = vsub.s32 %v89, %v91
    %v93 = vrot.slane %v85, %v92
    %v95 = vunpack.c.l.s4 1983009808
    %v96 = vunpack.c.0.s8 %v95
    %v97 = vlaneseq
    %v98 = vshrl.u32 %v97, 7
    %v99 = vsub.s32 %v96, %v98
    %v100 = vrot.slane %v86, %v99
    %v101 = vcombine.low %v93, %v100
    %v102 = vcombine.low %v72, %v76
    %v103 = vcombine.low %v80, %v84
    %v105 = vunpack.c.l.s4 1983009808
    %v106 = vunpack.c.0.s8 %v105
    %v107 = vlaneseq
    %v108 = vshrl.u32 %v107, 7
    %v109 = vsub.s32 %v106, %v108
    %v110 = vrot.slane %v102, %v109
    %v112 = vunpack.c.l.s4 1983009808
    %v113 = vunpack.c.0.s8 %v112
    %v114 = vlaneseq
    %v115 = vshrl.u32 %v114, 7
    %v116 = vsub.s32 %v113, %v115
    %v117 = vrot.slane %v103, %v116
    %v118 = vcombine.low %v110, %v117
    %v121 = vmul.f32 %v49, %v101
    %v122 = vmul.f32 %v50, %v118
    %v123 = vld [vmem:[%s3] sm:$0xff]
    %v125 = vlaneseq
    %v126 = vshrl.u32 %v125, 7
    %v127 = vsub.s32 0, %v126
    %v128 = vrot.slane %v123, %v127
    %v129 = vlaneseq
    %v130 = vshrl.u32 %v129, 7
    %v131 = vsub.s32 1, %v130
    %v132 = vrot.slane %v123, %v131
    %v133 = vlaneseq
    %v134 = vshrl.u32 %v133, 7
    %v135 = vsub.s32 2, %v134
    %v136 = vrot.slane %v123, %v135
    %v137 = vlaneseq
    %v138 = vshrl.u32 %v137, 7
    %v139 = vsub.s32 3, %v138
    %v140 = vrot.slane %v123, %v139
    %v141 = vlaneseq
    %v142 = vshrl.u32 %v141, 7
    %v143 = vsub.s32 4, %v142
    %v144 = vrot.slane %v123, %v143
    %v145 = vlaneseq
    %v146 = vshrl.u32 %v145, 7
    %v147 = vsub.s32 5, %v146
    %v148 = vrot.slane %v123, %v147
    %v149 = vlaneseq
    %v150 = vshrl.u32 %v149, 7
    %v151 = vsub.s32 6, %v150
    %v152 = vrot.slane %v123, %v151
    %v153 = vlaneseq
    %v154 = vshrl.u32 %v153, 7
    %v155 = vsub.s32 7, %v154
    %v156 = vrot.slane %v123, %v155
    %v157 = vcombine.low %v128, %v132
    %v158 = vcombine.low %v136, %v140
    %v160 = vunpack.c.l.s4 1983009808
    %v161 = vunpack.c.0.s8 %v160
    %v162 = vlaneseq
    %v163 = vshrl.u32 %v162, 7
    %v164 = vsub.s32 %v161, %v163
    %v165 = vrot.slane %v157, %v164
    %v167 = vunpack.c.l.s4 1983009808
    %v168 = vunpack.c.0.s8 %v167
    %v169 = vlaneseq
    %v170 = vshrl.u32 %v169, 7
    %v171 = vsub.s32 %v168, %v170
    %v172 = vrot.slane %v158, %v171
    %v173 = vcombine.low %v165, %v172
    %v174 = vcombine.low %v144, %v148
    %v175 = vcombine.low %v152, %v156
    %v177 = vunpack.c.l.s4 1983009808
    %v178 = vunpack.c.0.s8 %v177
    %v179 = vlaneseq
    %v180 = vshrl.u32 %v179, 7
    %v181 = vsub.s32 %v178, %v180
    %v182 = vrot.slane %v174, %v181
    %v184 = vunpack.c.l.s4 1983009808
    %v185 = vunpack.c.0.s8 %v184
    %v186 = vlaneseq
    %v187 = vshrl.u32 %v186, 7
    %v188 = vsub.s32 %v185, %v187
    %v189 = vrot.slane %v175, %v188
    %v190 = vcombine.low %v182, %v189
    %v193 = vadd.f32 %v121, %v173
    %v194 = vadd.f32 %v122, %v190
    %195 = vst [vmem:[#allocation8] sm:$0xff] %v193
    %196 = vst [vmem:[#allocation8 + $0x8] sm:$0xff] %v194
    // Predicated region
    $region26: #{tpu_custom_call.1} parent=1 // pred_check
      _
    $region27: #{tpu_custom_call.1} parent=1 // pred_check_branch
      %198 = sbr.rel (0) target = $region29
    $region28: #{tpu_custom_call.1} parent=1 // pred_region
      %s200 = ssub.s32 256, 256
      %201 = vsyncadd [#allocation5], %s200
      %s203 = sshll.u32 [#allocation8], 4
      %s204 = int_to_ptr.vmem [resolvable:$true] %s203
      %206 = dma.vmem_to_hbm [thread:$0]  %s204, 256, %s4, [#allocation5]
    $region29: #{tpu_custom_call.1} parent=1 // pred_fallthru
      _
    // Predicated region
    $region30: #{tpu_custom_call.1} parent=1 // pred_check
      _
    $region31: #{tpu_custom_call.1} parent=1 // pred_check_branch
      %208 = sbr.rel (0) target = $region33
    $region32: #{tpu_custom_call.1} parent=1 // pred_region
      %209 = dma.done [#allocation5], 256
    $region33: #{tpu_custom_call.1} parent=1 // pred_fallthru
      _
    %210 = vsyncpa [#allocation4], 1
    %211 = vsyncpa [#allocation7], 1
    %212 = vsyncpa [#allocation5], 1

</llo_original>
